<compile_context>
chip_gen: v5e
topology: v5e:2x2
jax: 0.10.0
libtpu: 0.0.40
codegen_flags: <defaults>
</compile_context>

<pallas_src>
import functools

import jax
import jax.numpy as jnp
import numpy as np
from jax.experimental import pallas as pl
from jax.experimental.pallas import tpu as pltpu

EPS = 1e-4  # LayerNorm eps in the PyTorch module


def duration_predictor_kernel(xm_ref, gb_ref, w_ref, par_ref, o_ref, *,
                              T, Cin, K, F, nb):
    rows = nb * T
    P = K // 2

    # --- unpack the merged x/mask slab (bf16; mask 0/1 is exact in bf16) ---
    xm = xm_ref[...]                                # (rows, Cin+1) bf16
    x = xm[:, :Cin].astype(jnp.float32)             # (rows, Cin)
    m = xm[:, Cin:Cin + 1].astype(jnp.float32)      # (rows, 1)  0/1

    # --- small parameter slab ---
    par = par_ref[...]                               # (4, F) f32
    g1, be1 = par[0:1, :], par[1:2, :]               # LayerNorm-1 affine
    wp2 = par[2:3, :]                                # g2 * proj weight (folded)
    bp2 = par[3:4, 0:1]                              # bp + sum(be2 * wp)

    # --- im2col conv weights (one merged bf16 slab, static slices) ---
    w1 = w_ref[0:K * Cin, :]                         # (K*Cin, F) bf16
    w2 = w_ref[K * Cin:K * Cin + K * F, :]           # (K*F,   F) bf16

    # --- per-sample global biases for this grid step, broadcast across T
    #     inside the kernel (no (N*T, F) HBM slab) ---
    i = pl.program_id(0)
    gb = gb_ref[pl.ds(i * nb, nb), :]                # (nb, 2F) f32
    if nb == 1:
        gb_rt = jnp.broadcast_to(gb, (rows, 2 * F))
    else:
        gb_rt = jnp.broadcast_to(gb[:, None, :],
                                 (nb, T, 2 * F)).reshape(rows, 2 * F)
    gb1 = gb_rt[:, :F]
    gb2 = gb_rt[:, F:]

    # time index of every row within its own sample (T is static).
    t_idx = jax.lax.broadcasted_iota(jnp.int32, (rows, 1), 0) % T

    def shifted(h, s):
        # row r -> h[r + s] if (r % T) + s stays inside the same sample's
        # [0, T) range, else 0 (== PyTorch Conv1d zero padding; also blocks
        # cross-sample leakage of the flattened batch).
        if s == 0:
            return h
        rolled = pltpu.roll(h, shift=(-s) % rows, axis=0)   # XLU, no VMEM copy
        valid = jnp.logical_and(t_idx + s >= 0, t_idx + s < T)
        return jnp.where(valid, rolled, 0.0)

    def conv(h, w, gb_add):
        # im2col along the lane axis -> single MXU matmul, bf16 operands
        # (cast per-tap BEFORE the concat), f32 accumulation.  gb_add already
        # contains the Conv1d bias + global bias.
        cols = [shifted(h, k - P).astype(jnp.bfloat16) for k in range(K)]
        hc = jnp.concatenate(cols, axis=-1)                  # (rows, K*C) bf16
        return jnp.dot(hc, w, preferred_element_type=jnp.float32) + gb_add

    def layernorm(y):
        mean = jnp.mean(y, axis=-1, keepdims=True)
        var = jnp.mean((y - mean) ** 2, axis=-1, keepdims=True)
        return (y - mean) * jax.lax.rsqrt(var + EPS)

    # --- block 1: conv_1 (+bias+global_bias1), relu, norm_1 ---
    h = jnp.maximum(conv(x * m, w1, gb1), 0.0)
    h = layernorm(h) * g1 + be1
    # TODO(synk): nn.Dropout modeled as identity (inference semantics).

    # --- block 2: conv_2 (+bias+global_bias2), relu, norm_2 (un-affined) ---
    h = jnp.maximum(conv(h * m, w2, gb2), 0.0)
    z = layernorm(h)

    # --- proj (1x1 conv) with LayerNorm-2's affine folded into wp2/bp2;
    #     one final mask multiply (exact because mask is 0/1) ---
    y = jnp.sum(z * wp2, axis=-1, keepdims=True) + bp2
    o_ref[...] = y * m


def duration_predictor_pallas(x_ntc, mask_nt1, gb1, gb2, p):
    """x_ntc: (N, T, Cin); mask_nt1: (N, T, 1); gb1/gb2: (N, F)."""
    N, T, Cin = x_ntc.shape
    K, _, F = p["w1"].shape

    # ---- grid choice ----
    # v7x has 2 TensorCores -> exactly one (large) grid step per core.
    # Single-TC chips (v5e/v6e): whole batch in one grid step (no per-step
    # pipeline bookkeeping).
    kind = jax.devices()[0].device_kind.lower()
    n_steps = 2 if ("v7" in kind and N > 1) else 1

    # pad the batch so it divides evenly over the grid (outputs sliced off).
    N_pad = ((N + n_steps - 1) // n_steps) * n_steps
    if N_pad != N:
        padn = N_pad - N
        x_ntc = jnp.concatenate(
            [x_ntc, jnp.zeros((padn, T, Cin), x_ntc.dtype)], axis=0)
        mask_nt1 = jnp.concatenate(
            [mask_nt1, jnp.zeros((padn, T, 1), mask_nt1.dtype)], axis=0)
        gb1 = jnp.concatenate([gb1, jnp.zeros((padn, F), gb1.dtype)], axis=0)
        gb2 = jnp.concatenate([gb2, jnp.zeros((padn, F), gb2.dtype)], axis=0)

    nb = N_pad // n_steps
    rows = nb * T

    # ---- merged inputs (4 DMAs total) ----
    # x with the 0/1 mask appended as an extra bf16 lane column.
    xm = jnp.concatenate(
        [x_ntc.reshape(N_pad * T, Cin), mask_nt1.reshape(N_pad * T, 1)],
        axis=-1).astype(jnp.bfloat16)                       # (N_pad*T, Cin+1)

    # per-sample global biases with the Conv1d biases folded in: (N_pad, 2F).
    gb_all = jnp.concatenate(
        [gb1 + p["b1"].reshape(1, F), gb2 + p["b2"].reshape(1, F)],
        axis=-1).astype(jnp.float32)

    # both im2col conv weights in one bf16 slab; rows [k*Cin:(k+1)*Cin] = tap k.
    w_all = jnp.concatenate(
        [p["w1"].reshape(K * Cin, F), p["w2"].reshape(K * F, F)],
        axis=0).astype(jnp.bfloat16)                        # (K*Cin + K*F, F)

    # small parameter slab: g1, be1, wp2 = g2*wp, bp2 = bp + sum(be2*wp).
    wp_row = p["wp"].reshape(1, F)
    wp2 = p["g2"].reshape(1, F) * wp_row
    bp2 = p["bp"].reshape(()) + jnp.sum(p["be2"].reshape(F) * p["wp"].reshape(F))
    par = jnp.concatenate([
        p["g1"].reshape(1, F), p["be1"].reshape(1, F),
        wp2, jnp.broadcast_to(jnp.reshape(bp2, (1, 1)), (1, F)),
    ], axis=0).astype(jnp.float32)                          # (4, F)

    out = pl.pallas_call(
        functools.partial(duration_predictor_kernel,
                          T=T, Cin=Cin, K=K, F=F, nb=nb),
        out_shape=jax.ShapeDtypeStruct((N_pad * T, 1), jnp.float32),
        grid=(n_steps,),
        in_specs=[
            pl.BlockSpec((rows, Cin + 1), lambda i: (i, 0)),         # x + mask
            pl.BlockSpec((N_pad, 2 * F), lambda i: (0, 0)),          # gb (tiny)
            pl.BlockSpec((K * Cin + K * F, F), lambda i: (0, 0)),    # weights
            pl.BlockSpec((4, F), lambda i: (0, 0)),                  # params
        ],
        out_specs=pl.BlockSpec((rows, 1), lambda i: (i, 0)),
        compiler_params=pltpu.CompilerParams(
            dimension_semantics=("parallel",)),
    )(xm, gb_all, w_all, par)
    return out.reshape(N_pad, T)[:N]   # == PyTorch (x * x_mask).squeeze(1)


def reference_jax(x_ntc, mask_nt1, gb1, gb2, p):
    """Pure-JAX reference with the PyTorch module's semantics (f32)."""
    K, _, F = p["w1"].shape
    P = K // 2
    N, T, _ = x_ntc.shape

    def conv(inp, w, b):
        xp = jnp.pad(inp, ((0, 0), (P, P), (0, 0)))
        acc = jnp.zeros((N, T, w.shape[2]), jnp.float32) + b.reshape(1, 1, -1)
        for k in range(K):
            acc = acc + jnp.einsum("ntc,cf->ntf", xp[:, k:k + T, :], w[k])
        return acc

    def ln(h, g, be):
        mean = h.mean(-1, keepdims=True)
        var = ((h - mean) ** 2).mean(-1, keepdims=True)
        return (h - mean) * jax.lax.rsqrt(var + EPS) * g.reshape(1, 1, -1) + be.reshape(1, 1, -1)

    h = jnp.maximum(conv(x_ntc * mask_nt1, p["w1"], p["b1"]) + gb1[:, None, :], 0.0)
    h = ln(h, p["g1"], p["be1"])
    h = jnp.maximum(conv(h * mask_nt1, p["w2"], p["b2"]) + gb2[:, None, :], 0.0)
    h = ln(h, p["g2"], p["be2"])
    y = jnp.einsum("ntf,fo->nto", h * mask_nt1, p["wp"]) + p["bp"].reshape(1, 1, 1)
    return (y * mask_nt1)[..., 0]


if __name__ == "__main__":
    # small shapes consistent with the module's forward
    N, Cin, F, K, T = 2, 16, 32, 3, 16
    SPKR, GST = 8, 4

    key = jax.random.PRNGKey(0)
    keys = jax.random.split(key, 20)
    nrm = lambda k, s: (0.1 * jax.random.normal(k, s)).astype(jnp.float32)

    # conv / norm / proj parameters; conv weights stored as (K, Cin, Cout)
    params = {
        "w1": nrm(keys[0], (K, Cin, F)),
        "b1": nrm(keys[1], (1, F)),
        "w2": nrm(keys[2], (K, F, F)),
        "b2": nrm(keys[3], (1, F)),
        "g1": jnp.ones((1, F), jnp.float32) + nrm(keys[6], (1, F)),
        "be1": nrm(keys[7], (1, F)),
        "g2": jnp.ones((1, F), jnp.float32) + nrm(keys[8], (1, F)),
        "be2": nrm(keys[9], (1, F)),
        "wp": nrm(keys[4], (F, 1)),
        "bp": nrm(keys[5], (1, 1)),
    }

    # bias-projection Linear layers (glue, plain JAX), stored as (in, out)
    W_spk, b_spk = nrm(keys[10], (SPKR, 2 * F)), nrm(keys[11], (2 * F,))
    W_spd, b_spd = nrm(keys[12], (1, 2 * F)), nrm(keys[13], (2 * F,))
    W_gst, b_gst = nrm(keys[14], (GST, 2 * F)), nrm(keys[15], (2 * F,))

    # inputs (PyTorch layout: x (N, Cin, T), x_mask (N, 1, T))
    x_nct = nrm(keys[16], (N, Cin, T)) * 10.0
    lengths = jnp.array([T, T - 4], jnp.int32)
    x_mask_n1t = (jnp.arange(T)[None, None, :] < lengths[:, None, None]).astype(jnp.float32)
    spkr_vec = nrm(keys[17], (N, SPKR))
    speed = nrm(keys[18], (N,)) + 1.0
    gst = nrm(keys[19], (N, GST))

    # global biases (speaker / speed / gst projections), chunked as in PyTorch
    spkr_biases = spkr_vec @ W_spk + b_spk                    # (N, 2F)
    speed_biases = speed[:, None] @ W_spd + b_spd             # (N, 2F)
    gst_biases = gst @ W_gst + b_gst                          # (N, 2F)
    gb = spkr_biases + speed_biases + gst_biases
    gb1, gb2 = gb[:, :F], gb[:, F:]

    # transpose to the kernel layout (N, T, C)
    x_ntc = jnp.transpose(x_nct, (0, 2, 1))
    mask_nt1 = jnp.transpose(x_mask_n1t, (0, 2, 1))

    out = duration_predictor_pallas(x_ntc, mask_nt1, gb1, gb2, params)
    out = jax.block_until_ready(out)

    # The kernel feeds bf16 x / conv weights to the MXU (f32 accumulate); give
    # the f32 reference the same rounded values so only the in-kernel bf16
    # cast of the conv_2 activations (and the LN2-affine fold rounding order)
    # remains as a (tiny) divergence source.
    bf = lambda a: a.astype(jnp.bfloat16).astype(jnp.float32)
    params_ref = dict(params, w1=bf(params["w1"]), w2=bf(params["w2"]))
    ref = jax.block_until_ready(
        reference_jax(bf(x_ntc), mask_nt1, gb1, gb2, params_ref))

    np.testing.assert_allclose(np.asarray(out), np.asarray(ref), rtol=1e-2, atol=1e-2)
    assert out.shape == (N, T)

    print("KERNEL_OK")
</pallas_src>

<mosaic_0001>
module attributes {stable_mosaic.version = 11 : i64} {
  func.func @duration_predictor_kernel(%arg0: i32, %arg1: memref<32x17xbf16, #tpu.memory_space<vmem>>, %arg2: memref<2x64xf32, #tpu.memory_space<vmem>>, %arg3: memref<144x32xbf16, #tpu.memory_space<vmem>>, %arg4: memref<4x32xf32, #tpu.memory_space<vmem>>, %arg5: memref<32x1xf32, #tpu.memory_space<vmem>>) attributes {dimension_semantics = [#tpu.dimension_semantics<parallel>], iteration_bounds = array<i64: 1>, scalar_prefetch = 0 : i64, scratch_operands = 0 : i64, tpu.core_type = #tpu.core_type<tc>, window_params = [{transform_indices = @transform_0, window_bounds = array<i64: 32, 17>}, {pipeline_mode = #tpu.pipeline_mode<synchronous>, transform_indices = @transform_1, window_bounds = array<i64: 2, 64>}, {pipeline_mode = #tpu.pipeline_mode<synchronous>, transform_indices = @transform_2, window_bounds = array<i64: 144, 32>}, {pipeline_mode = #tpu.pipeline_mode<synchronous>, transform_indices = @transform_3, window_bounds = array<i64: 4, 32>}, {transform_indices = @transform_4, window_bounds = array<i64: 32, 1>}]} {
    %c0 = arith.constant 0 : index
    %c0_0 = arith.constant 0 : index
    %0 = vector.load %arg1[%c0, %c0_0] : memref<32x17xbf16, #tpu.memory_space<vmem>>, vector<32x17xbf16>
    %1 = vector.extract_strided_slice %0 {offsets = [0, 0], sizes = [32, 16], strides = [1, 1]} : vector<32x17xbf16> to vector<32x16xbf16>
    %2 = arith.extf %1 : vector<32x16xbf16> to vector<32x16xf32>
    %3 = vector.extract_strided_slice %0 {offsets = [0, 16], sizes = [32, 1], strides = [1, 1]} : vector<32x17xbf16> to vector<32x1xbf16>
    %4 = arith.extf %3 : vector<32x1xbf16> to vector<32x1xf32>
    %c0_1 = arith.constant 0 : index
    %c0_2 = arith.constant 0 : index
    %5 = vector.load %arg4[%c0_1, %c0_2] : memref<4x32xf32, #tpu.memory_space<vmem>>, vector<4x32xf32>
    %6 = vector.extract_strided_slice %5 {offsets = [0, 0], sizes = [1, 32], strides = [1, 1]} : vector<4x32xf32> to vector<1x32xf32>
    %7 = vector.extract_strided_slice %5 {offsets = [1, 0], sizes = [1, 32], strides = [1, 1]} : vector<4x32xf32> to vector<1x32xf32>
    %8 = vector.extract_strided_slice %5 {offsets = [2, 0], sizes = [1, 32], strides = [1, 1]} : vector<4x32xf32> to vector<1x32xf32>
    %9 = vector.extract_strided_slice %5 {offsets = [3, 0], sizes = [1, 1], strides = [1, 1]} : vector<4x32xf32> to vector<1x1xf32>
    %c0_3 = arith.constant 0 : index
    %c0_4 = arith.constant 0 : index
    %10 = vector.load %arg3[%c0_3, %c0_4] : memref<144x32xbf16, #tpu.memory_space<vmem>>, vector<48x32xbf16>
    %c48 = arith.constant 48 : index
    %c0_5 = arith.constant 0 : index
    %11 = vector.load %arg3[%c48, %c0_5] : memref<144x32xbf16, #tpu.memory_space<vmem>>, vector<96x32xbf16>
    %c2_i32 = arith.constant 2 : i32
    %12 = arith.muli %arg0, %c2_i32 : i32
    %13 = arith.index_cast %12 : i32 to index
    %c0_6 = arith.constant 0 : index
    %14 = vector.load %arg2[%13, %c0_6] : memref<2x64xf32, #tpu.memory_space<vmem>>, vector<2x64xf32>
    %15 = vector.shape_cast %14 : vector<2x64xf32> to vector<2x1x64xf32>
    %16 = vector.shape_cast %15 : vector<2x1x64xf32> to vector<2x1x64xf32>
    %17 = vector.broadcast %16 : vector<2x1x64xf32> to vector<2x16x64xf32>
    %18 = vector.shape_cast %17 : vector<2x16x64xf32> to vector<32x64xf32>
    %19 = vector.extract_strided_slice %18 {offsets = [0, 0], sizes = [32, 32], strides = [1, 1]} : vector<32x64xf32> to vector<32x32xf32>
    %20 = vector.extract_strided_slice %18 {offsets = [0, 32], sizes = [32, 32], strides = [1, 1]} : vector<32x64xf32> to vector<32x32xf32>
    %21 = tpu.iota {dimensions = array<i32: 0>} : vector<32x1xi32>
    %c16_i32 = arith.constant 16 : i32
    %c0_i32 = arith.constant 0 : i32
    %22 = arith.cmpi eq, %c16_i32, %c0_i32 : i32
    %c1_i32 = arith.constant 1 : i32
    %23 = arith.select %22, %c1_i32, %c16_i32 : i32
    %24 = vector.broadcast %23 : i32 to vector<32x1xi32>
    %25 = arith.remsi %21, %24 : vector<32x1xi32>
    %c0_i32_7 = arith.constant 0 : i32
    %26 = vector.broadcast %c0_i32_7 : i32 to vector<32x1xi32>
    %27 = arith.cmpi ne, %25, %26 : vector<32x1xi32>
    %c0_i32_8 = arith.constant 0 : i32
    %28 = vector.broadcast %c0_i32_8 : i32 to vector<32x1xi32>
    %29 = arith.cmpi slt, %25, %28 : vector<32x1xi32>
    %c0_i32_9 = arith.constant 0 : i32
    %30 = arith.cmpi slt, %23, %c0_i32_9 : i32
    %31 = vector.broadcast %30 : i1 to vector<32x1xi1>
    %32 = vector.broadcast %31 : vector<32x1xi1> to vector<32x1xi1>
    %33 = arith.xori %29, %32 : vector<32x1xi1>
    %34 = arith.andi %33, %27 : vector<32x1xi1>
    %35 = vector.broadcast %23 : i32 to vector<32x1xi32>
    %36 = arith.addi %25, %35 : vector<32x1xi32>
    %37 = arith.select %34, %36, %25 : vector<32x1xi1>, vector<32x1xi32>
    %38 = vector.broadcast %4 : vector<32x1xf32> to vector<32x16xf32>
    %39 = arith.mulf %2, %38 : vector<32x16xf32>
    %c1_i32_10 = arith.constant 1 : i32
    %40 = tpu.dynamic_rotate %39 by %c1_i32_10 dim 0 : vector<32x16xf32>, i32 -> vector<32x16xf32>
    %c-1_i32 = arith.constant -1 : i32
    %41 = vector.broadcast %c-1_i32 : i32 to vector<32x1xi32>
    %42 = arith.addi %37, %41 : vector<32x1xi32>
    %c0_i32_11 = arith.constant 0 : i32
    %43 = vector.broadcast %c0_i32_11 : i32 to vector<32x1xi32>
    %44 = arith.cmpi sge, %42, %43 : vector<32x1xi32>
    %c-1_i32_12 = arith.constant -1 : i32
    %45 = vector.broadcast %c-1_i32_12 : i32 to vector<32x1xi32>
    %46 = arith.addi %37, %45 : vector<32x1xi32>
    %c16_i32_13 = arith.constant 16 : i32
    %47 = vector.broadcast %c16_i32_13 : i32 to vector<32x1xi32>
    %48 = arith.cmpi slt, %46, %47 : vector<32x1xi32>
    %49 = arith.andi %44, %48 : vector<32x1xi1>
    %cst = arith.constant 0.000000e+00 : f32
    %50 = vector.shape_cast %49 : vector<32x1xi1> to vector<32x1xi1>
    %51 = vector.broadcast %50 : vector<32x1xi1> to vector<32x16xi1>
    %52 = vector.broadcast %cst : f32 to vector<32x16xf32>
    %53 = arith.select %51, %40, %52 : vector<32x16xi1>, vector<32x16xf32>
    %54 = arith.truncf %53 : vector<32x16xf32> to vector<32x16xbf16>
    %55 = arith.truncf %39 : vector<32x16xf32> to vector<32x16xbf16>
    %c31_i32 = arith.constant 31 : i32
    %56 = tpu.dynamic_rotate %39 by %c31_i32 dim 0 : vector<32x16xf32>, i32 -> vector<32x16xf32>
    %c1_i32_14 = arith.constant 1 : i32
    %57 = vector.broadcast %c1_i32_14 : i32 to vector<32x1xi32>
    %58 = arith.addi %37, %57 : vector<32x1xi32>
    %c0_i32_15 = arith.constant 0 : i32
    %59 = vector.broadcast %c0_i32_15 : i32 to vector<32x1xi32>
    %60 = arith.cmpi sge, %58, %59 : vector<32x1xi32>
    %c1_i32_16 = arith.constant 1 : i32
    %61 = vector.broadcast %c1_i32_16 : i32 to vector<32x1xi32>
    %62 = arith.addi %37, %61 : vector<32x1xi32>
    %c16_i32_17 = arith.constant 16 : i32
    %63 = vector.broadcast %c16_i32_17 : i32 to vector<32x1xi32>
    %64 = arith.cmpi slt, %62, %63 : vector<32x1xi32>
    %65 = arith.andi %60, %64 : vector<32x1xi1>
    %cst_18 = arith.constant 0.000000e+00 : f32
    %66 = vector.shape_cast %65 : vector<32x1xi1> to vector<32x1xi1>
    %67 = vector.broadcast %66 : vector<32x1xi1> to vector<32x16xi1>
    %68 = vector.broadcast %cst_18 : f32 to vector<32x16xf32>
    %69 = arith.select %67, %56, %68 : vector<32x16xi1>, vector<32x16xf32>
    %70 = arith.truncf %69 : vector<32x16xf32> to vector<32x16xbf16>
    %71 = tpu.concatenate %54, %55, %70 in 1 : vector<32x16xbf16>, vector<32x16xbf16>, vector<32x16xbf16> -> vector<32x48xbf16>
    %cst_19 = arith.constant dense<0.000000e+00> : vector<32x32xf32>
    %72 = tpu.matmul %71, %10, %cst_19 {dimension_numbers = #tpu.dot_dimension_numbers<[1], [0], [0], [1], [0, 0, 1, 1], [], []>} : vector<32x48xbf16>, vector<48x32xbf16>, vector<32x32xf32> -> vector<32x32xf32>
    %73 = arith.addf %72, %19 : vector<32x32xf32>
    %cst_20 = arith.constant 0.000000e+00 : f32
    %74 = vector.broadcast %cst_20 : f32 to vector<32x32xf32>
    %75 = arith.maximumf %73, %74 : vector<32x32xf32>
    %cst_21 = arith.constant dense<0.000000e+00> : vector<32xf32>
    %76 = vector.multi_reduction <add>, %75, %cst_21 [1] : vector<32x32xf32> to vector<32xf32>
    %77 = vector.shape_cast %76 : vector<32xf32> to vector<32x1xf32>
    %cst_22 = arith.constant 3.200000e+01 : f32
    %78 = vector.broadcast %cst_22 : f32 to vector<32x1xf32>
    %79 = arith.divf %77, %78 : vector<32x1xf32>
    %80 = vector.broadcast %79 : vector<32x1xf32> to vector<32x32xf32>
    %81 = arith.subf %75, %80 : vector<32x32xf32>
    %82 = arith.mulf %81, %81 : vector<32x32xf32>
    %cst_23 = arith.constant dense<0.000000e+00> : vector<32xf32>
    %83 = vector.multi_reduction <add>, %82, %cst_23 [1] : vector<32x32xf32> to vector<32xf32>
    %84 = vector.shape_cast %83 : vector<32xf32> to vector<32x1xf32>
    %cst_24 = arith.constant 3.200000e+01 : f32
    %85 = vector.broadcast %cst_24 : f32 to vector<32x1xf32>
    %86 = arith.divf %84, %85 : vector<32x1xf32>
    %87 = vector.broadcast %79 : vector<32x1xf32> to vector<32x32xf32>
    %88 = arith.subf %75, %87 : vector<32x32xf32>
    %cst_25 = arith.constant 9.99999974E-5 : f32
    %89 = vector.broadcast %cst_25 : f32 to vector<32x1xf32>
    %90 = arith.addf %86, %89 : vector<32x1xf32>
    %91 = math.rsqrt %90 : vector<32x1xf32>
    %92 = vector.broadcast %91 : vector<32x1xf32> to vector<32x32xf32>
    %93 = arith.mulf %88, %92 : vector<32x32xf32>
    %94 = vector.broadcast %6 : vector<1x32xf32> to vector<32x32xf32>
    %95 = arith.mulf %93, %94 : vector<32x32xf32>
    %96 = vector.broadcast %7 : vector<1x32xf32> to vector<32x32xf32>
    %97 = arith.addf %95, %96 : vector<32x32xf32>
    %98 = vector.broadcast %4 : vector<32x1xf32> to vector<32x32xf32>
    %99 = arith.mulf %97, %98 : vector<32x32xf32>
    %c1_i32_26 = arith.constant 1 : i32
    %100 = tpu.dynamic_rotate %99 by %c1_i32_26 dim 0 : vector<32x32xf32>, i32 -> vector<32x32xf32>
    %c-1_i32_27 = arith.constant -1 : i32
    %101 = vector.broadcast %c-1_i32_27 : i32 to vector<32x1xi32>
    %102 = arith.addi %37, %101 : vector<32x1xi32>
    %c0_i32_28 = arith.constant 0 : i32
    %103 = vector.broadcast %c0_i32_28 : i32 to vector<32x1xi32>
    %104 = arith.cmpi sge, %102, %103 : vector<32x1xi32>
    %c-1_i32_29 = arith.constant -1 : i32
    %105 = vector.broadcast %c-1_i32_29 : i32 to vector<32x1xi32>
    %106 = arith.addi %37, %105 : vector<32x1xi32>
    %c16_i32_30 = arith.constant 16 : i32
    %107 = vector.broadcast %c16_i32_30 : i32 to vector<32x1xi32>
    %108 = arith.cmpi slt, %106, %107 : vector<32x1xi32>
    %109 = arith.andi %104, %108 : vector<32x1xi1>
    %cst_31 = arith.constant 0.000000e+00 : f32
    %110 = vector.shape_cast %109 : vector<32x1xi1> to vector<32x1xi1>
    %111 = vector.broadcast %110 : vector<32x1xi1> to vector<32x32xi1>
    %112 = vector.broadcast %cst_31 : f32 to vector<32x32xf32>
    %113 = arith.select %111, %100, %112 : vector<32x32xi1>, vector<32x32xf32>
    %114 = arith.truncf %113 : vector<32x32xf32> to vector<32x32xbf16>
    %115 = arith.truncf %99 : vector<32x32xf32> to vector<32x32xbf16>
    %c31_i32_32 = arith.constant 31 : i32
    %116 = tpu.dynamic_rotate %99 by %c31_i32_32 dim 0 : vector<32x32xf32>, i32 -> vector<32x32xf32>
    %c1_i32_33 = arith.constant 1 : i32
    %117 = vector.broadcast %c1_i32_33 : i32 to vector<32x1xi32>
    %118 = arith.addi %37, %117 : vector<32x1xi32>
    %c0_i32_34 = arith.constant 0 : i32
    %119 = vector.broadcast %c0_i32_34 : i32 to vector<32x1xi32>
    %120 = arith.cmpi sge, %118, %119 : vector<32x1xi32>
    %c1_i32_35 = arith.constant 1 : i32
    %121 = vector.broadcast %c1_i32_35 : i32 to vector<32x1xi32>
    %122 = arith.addi %37, %121 : vector<32x1xi32>
    %c16_i32_36 = arith.constant 16 : i32
    %123 = vector.broadcast %c16_i32_36 : i32 to vector<32x1xi32>
    %124 = arith.cmpi slt, %122, %123 : vector<32x1xi32>
    %125 = arith.andi %120, %124 : vector<32x1xi1>
    %cst_37 = arith.constant 0.000000e+00 : f32
    %126 = vector.shape_cast %125 : vector<32x1xi1> to vector<32x1xi1>
    %127 = vector.broadcast %126 : vector<32x1xi1> to vector<32x32xi1>
    %128 = vector.broadcast %cst_37 : f32 to vector<32x32xf32>
    %129 = arith.select %127, %116, %128 : vector<32x32xi1>, vector<32x32xf32>
    %130 = arith.truncf %129 : vector<32x32xf32> to vector<32x32xbf16>
    %131 = tpu.concatenate %114, %115, %130 in 1 : vector<32x32xbf16>, vector<32x32xbf16>, vector<32x32xbf16> -> vector<32x96xbf16>
    %cst_38 = arith.constant dense<0.000000e+00> : vector<32x32xf32>
    %132 = tpu.matmul %131, %11, %cst_38 {dimension_numbers = #tpu.dot_dimension_numbers<[1], [0], [0], [1], [0, 0, 1, 1], [], []>} : vector<32x96xbf16>, vector<96x32xbf16>, vector<32x32xf32> -> vector<32x32xf32>
    %133 = arith.addf %132, %20 : vector<32x32xf32>
    %cst_39 = arith.constant 0.000000e+00 : f32
    %134 = vector.broadcast %cst_39 : f32 to vector<32x32xf32>
    %135 = arith.maximumf %133, %134 : vector<32x32xf32>
    %cst_40 = arith.constant dense<0.000000e+00> : vector<32xf32>
    %136 = vector.multi_reduction <add>, %135, %cst_40 [1] : vector<32x32xf32> to vector<32xf32>
    %137 = vector.shape_cast %136 : vector<32xf32> to vector<32x1xf32>
    %cst_41 = arith.constant 3.200000e+01 : f32
    %138 = vector.broadcast %cst_41 : f32 to vector<32x1xf32>
    %139 = arith.divf %137, %138 : vector<32x1xf32>
    %140 = vector.broadcast %139 : vector<32x1xf32> to vector<32x32xf32>
    %141 = arith.subf %135, %140 : vector<32x32xf32>
    %142 = arith.mulf %141, %141 : vector<32x32xf32>
    %cst_42 = arith.constant dense<0.000000e+00> : vector<32xf32>
    %143 = vector.multi_reduction <add>, %142, %cst_42 [1] : vector<32x32xf32> to vector<32xf32>
    %144 = vector.shape_cast %143 : vector<32xf32> to vector<32x1xf32>
    %cst_43 = arith.constant 3.200000e+01 : f32
    %145 = vector.broadcast %cst_43 : f32 to vector<32x1xf32>
    %146 = arith.divf %144, %145 : vector<32x1xf32>
    %147 = vector.broadcast %139 : vector<32x1xf32> to vector<32x32xf32>
    %148 = arith.subf %135, %147 : vector<32x32xf32>
    %cst_44 = arith.constant 9.99999974E-5 : f32
    %149 = vector.broadcast %cst_44 : f32 to vector<32x1xf32>
    %150 = arith.addf %146, %149 : vector<32x1xf32>
    %151 = math.rsqrt %150 : vector<32x1xf32>
    %152 = vector.broadcast %151 : vector<32x1xf32> to vector<32x32xf32>
    %153 = arith.mulf %148, %152 : vector<32x32xf32>
    %154 = vector.broadcast %8 : vector<1x32xf32> to vector<32x32xf32>
    %155 = arith.mulf %153, %154 : vector<32x32xf32>
    %cst_45 = arith.constant dense<0.000000e+00> : vector<32xf32>
    %156 = vector.multi_reduction <add>, %155, %cst_45 [1] : vector<32x32xf32> to vector<32xf32>
    %157 = vector.shape_cast %156 : vector<32xf32> to vector<32x1xf32>
    %158 = vector.broadcast %9 : vector<1x1xf32> to vector<32x1xf32>
    %159 = arith.addf %157, %158 : vector<32x1xf32>
    %160 = arith.mulf %159, %4 : vector<32x1xf32>
    %c0_46 = arith.constant 0 : index
    %c0_47 = arith.constant 0 : index
    %161 = vector.load %arg5[%c0_46, %c0_47] : memref<32x1xf32, #tpu.memory_space<vmem>>, vector<32x1xf32>
    tpu.vector_store %arg5[%c0_46, %c0_47], %160 {strides = array<i32>} : memref<32x1xf32, #tpu.memory_space<vmem>>, vector<32x1xf32>,
    return
  }
  func.func @transform_0(%arg0: i32) -> (i32, i32) {
    %c0_i32 = arith.constant 0 : i32
    %c0_i32_0 = arith.constant 0 : i32
    return %arg0, %c0_i32 : i32, i32
  }
  func.func @transform_1(%arg0: i32) -> (i32, i32) {
    %c0_i32 = arith.constant 0 : i32
    %c0_i32_0 = arith.constant 0 : i32
    %c0_i32_1 = arith.constant 0 : i32
    return %c0_i32, %c0_i32_0 : i32, i32
  }
  func.func @transform_2(%arg0: i32) -> (i32, i32) {
    %c0_i32 = arith.constant 0 : i32
    %c0_i32_0 = arith.constant 0 : i32
    %c0_i32_1 = arith.constant 0 : i32
    return %c0_i32, %c0_i32_0 : i32, i32
  }
  func.func @transform_3(%arg0: i32) -> (i32, i32) {
    %c0_i32 = arith.constant 0 : i32
    %c0_i32_0 = arith.constant 0 : i32
    %c0_i32_1 = arith.constant 0 : i32
    return %c0_i32, %c0_i32_0 : i32, i32
  }
  func.func @transform_4(%arg0: i32) -> (i32, i32) {
    %c0_i32 = arith.constant 0 : i32
    %c0_i32_0 = arith.constant 0 : i32
    return %arg0, %c0_i32 : i32, i32
  }
}

</mosaic_0001>

<llo_original>
// kernel: tpu_custom_call.1
$region0: #{tpu_custom_call.1}
  #allocation0 [shape = 'u32[]', space=smem, size = 0x4, offset = 0x4, fixed_abs, tag = 'smem constant byte address 0x4 - core index']
  #allocation1 [shape = 'u32[72,128]{1,0:T(1,128)}', space=vmem, size = 0x9000, scoped, tag = 'internal scratch']
  %s0 = inlined_call_operand.vmem [shape: bf16[32,17], index: 0, kind: input, shape index: {}]
  %s1 = inlined_call_operand.vmem [shape: f32[2,64], index: 1, kind: input, shape index: {}]
  %s2 = inlined_call_operand.vmem [shape: bf16[144,32], index: 2, kind: input, shape index: {}]
  %s3 = inlined_call_operand.vmem [shape: f32[4,32], index: 3, kind: input, shape index: {}]
  %s4 = inlined_call_operand.vmem [shape: f32[32,1], index: 4, kind: output, shape index: {}]
  %s5 = sld [smem:[#allocation0]]
  $region26: #{tpu_custom_call.1} parent=0
    _
  %s7 = ssub.s32 1, %s5
  %s8 = scalar_select 0, %s7, %s5
  // Predicated region
  $region2: #{tpu_custom_call.1} parent=0 // pred_check
    _
  $region3: #{tpu_custom_call.1} parent=0 // pred_check_branch
    %10 = sbr.rel (0) target = $region5
  $region4: #{tpu_custom_call.1} parent=0 // pred_region
    _
  $region5: #{tpu_custom_call.1} parent=0 // pred_fallthru
    _
  // Predicated region
  $region6: #{tpu_custom_call.1} parent=0 // pred_check
    _
  $region7: #{tpu_custom_call.1} parent=0 // pred_check_branch
    %12 = sbr.rel (0) target = $region9
  $region8: #{tpu_custom_call.1} parent=0 // pred_region
    _
  $region9: #{tpu_custom_call.1} parent=0 // pred_fallthru
    _
  // Predicated region
  $region10: #{tpu_custom_call.1} parent=0 // pred_check
    _
  $region11: #{tpu_custom_call.1} parent=0 // pred_check_branch
    %14 = sbr.rel (0) target = $region13
  $region12: #{tpu_custom_call.1} parent=0 // pred_region
    _
  $region13: #{tpu_custom_call.1} parent=0 // pred_fallthru
    _
  // Predicated region
  $region14: #{tpu_custom_call.1} parent=0 // pred_check
    _
  $region15: #{tpu_custom_call.1} parent=0 // pred_check_branch
    %16 = sbr.rel (0) target = $region17
  $region16: #{tpu_custom_call.1} parent=0 // pred_region
    _
  $region17: #{tpu_custom_call.1} parent=0 // pred_fallthru
    _
  %v18 = vld [vmem:[%s0] sm:$0xf]
  %v19 = vld [vmem:[%s0 + $0x4] sm:$0xf]
  %v20 = vld [vmem:[%s0 + $0x8] sm:$0xf]
  %v21 = vld [vmem:[%s0 + $0xc] sm:$0xf]
  %v22 = vunpack.c.l.bf16 %v18
  %v23 = vunpack.c.l.bf16 %v19
  %v24 = vunpack.c.l.bf16 %v20
  %v25 = vunpack.c.l.bf16 %v21
  %v26 = vld [vmem:[%s3] sm:$0xf]
  %v27 = vld [vmem:[%s2] sm:$0xf]
  %v28 = vld [vmem:[%s2 + $0x4] sm:$0xf]
  %v29 = vld [vmem:[%s2 + $0x8] sm:$0xf]
  %v30 = vld [vmem:[%s2 + $0xc] sm:$0xf]
  %v31 = vld [vmem:[%s2 + $0x10] sm:$0xf]
  %v32 = vld [vmem:[%s2 + $0x14] sm:$0xf]
  %v33 = vld [vmem:[%s2 + $0x18] sm:$0xf]
  %v34 = vld [vmem:[%s2 + $0x1c] sm:$0xf]
  %v35 = vld [vmem:[%s2 + $0x20] sm:$0xf]
  %v36 = vld [vmem:[%s2 + $0x24] sm:$0xf]
  %v37 = vld [vmem:[%s2 + $0x28] sm:$0xf]
  %v38 = vld [vmem:[%s2 + $0x2c] sm:$0xf]
  %v39 = vld [vmem:[%s2 + $0x30] sm:$0xf]
  %v40 = vld [vmem:[%s2 + $0x34] sm:$0xf]
  %v41 = vld [vmem:[%s2 + $0x38] sm:$0xf]
  %v42 = vld [vmem:[%s2 + $0x3c] sm:$0xf]
  %v43 = vld [vmem:[%s2 + $0x40] sm:$0xf]
  %v44 = vld [vmem:[%s2 + $0x44] sm:$0xf]
  %s45 = smul.u32 0, 2
  %s46 = scalar_lea.vmem %s1, %s45
  %v47 = vld [vmem:[%s46] sm:$0x3]
  %v49 = vrot.slane %v47, 1
  %v50 = vperm.slane %v47, 0
  %v51 = vperm.slane %v49, 0
  %v54 = vlaneseq
  %v55 = vshrl.u32 %v54, 7
  %v56 = vadd.s32 %v55, 8
  %v57 = vadd.s32 %v55, 16
  %v58 = vadd.s32 %v55, 24
  %vm59 = vcmp.lt.s32.totalorder %v55, 0
  %v60 = vsub.s32 0, %v55
  %v61 = vsel %vm59, %v60, %v55
  %v62 = vshrl.u32 %v61, 4
  %v63 = vand.u32 %v61, 15
  %v64 = vsub.s32 0, %v63
  %v65 = vsel %vm59, %v64, %v63
  %vm66 = vcmp.lt.s32.totalorder %v56, 0
  %v67 = vsub.s32 0, %v56
  %v68 = vsel %vm66, %v67, %v56
  %v69 = vshrl.u32 %v68, 4
  %v70 = vand.u32 %v68, 15
  %v71 = vsub.s32 0, %v70
  %v72 = vsel %vm66, %v71, %v70
  %vm73 = vcmp.lt.s32.totalorder %v57, 0
  %v74 = vsub.s32 0, %v57
  %v75 = vsel %vm73, %v74, %v57
  %v76 = vshrl.u32 %v75, 4
  %v77 = vand.u32 %v75, 15
  %v78 = vsub.s32 0, %v77
  %v79 = vsel %vm73, %v78, %v77
  %vm80 = vcmp.lt.s32.totalorder %v58, 0
  %v81 = vsub.s32 0, %v58
  %v82 = vsel %vm80, %v81, %v58
  %v83 = vshrl.u32 %v82, 4
  %v84 = vand.u32 %v82, 15
  %v85 = vsub.s32 0, %v84
  %v86 = vsel %vm80, %v85, %v84
  %vm87 = vcmp.ne.s32.totalorder %v65, 0
  %vm88 = vcmp.ne.s32.totalorder %v72, 0
  %vm89 = vcmp.ne.s32.totalorder %v79, 0
  %vm90 = vcmp.ne.s32.totalorder %v86, 0
  %vm91 = vcmp.lt.s32.totalorder %v65, 0
  %vm92 = vcmp.lt.s32.totalorder %v72, 0
  %vm93 = vcmp.lt.s32.totalorder %v79, 0
  %vm94 = vcmp.lt.s32.totalorder %v86, 0
  %vm95 = vmand %vm91, %vm87
  %vm96 = vmand %vm92, %vm88
  %vm97 = vmand %vm93, %vm89
  %vm98 = vmand %vm94, %vm90
  %v99 = vadd.s32 %v65, 16
  %v100 = vadd.s32 %v72, 16
  %v101 = vadd.s32 %v79, 16
  %v102 = vadd.s32 %v86, 16
  %v103 = vsel %vm95, %v99, %v65
  %v104 = vsel %vm96, %v100, %v72
  %v105 = vsel %vm97, %v101, %v79
  %v106 = vsel %vm98, %v102, %v86
  %108 = vset.pattern.permute.xlu0 16
  %109 = vperm.xlu0 %108, %v22
  %v110 = vpop.permute.xlu0 %109
  %113 = vset.pattern.permute.xlu0 16
  %114 = vperm.xlu0 %113, %v23
  %v115 = vpop.permute.xlu0 %114
  %118 = vset.pattern.permute.xlu0 16
  %119 = vperm.xlu0 %118, %v24
  %v120 = vpop.permute.xlu0 %119
  %123 = vset.pattern.permute.xlu0 16
  %124 = vperm.xlu0 %123, %v25
  %v125 = vpop.permute.xlu0 %124
  %v127 = vmul.f32 %v22, %v110
  %v128 = vmul.f32 %v23, %v115
  %v129 = vmul.f32 %v24, %v120
  %v130 = vmul.f32 %v25, %v125
  %v131 = vrot.slane %v127, 7
  %v132 = vrot.slane %v128, 7
  %v133 = vrot.slane %v129, 7
  %v134 = vrot.slane %v130, 7
  %vm135 = vcmp.lt.s32.totalorder %v55, 1
  %v136 = vsel %vm135, %v133, %v134
  %v137 = vsel %vm135, %v132, %v133
  %v138 = vsel %vm135, %v131, %v132
  %v139 = vsel %vm135, %v134, %v131
  %v140 = vadd.s32 %v103, 4294967295
  %v141 = vadd.s32 %v104, 4294967295
  %v142 = vadd.s32 %v105, 4294967295
  %v143 = vadd.s32 %v106, 4294967295
  %vm144 = vcmp.ge.s32.totalorder %v140, 0
  %vm145 = vcmp.ge.s32.totalorder %v141, 0
  %vm146 = vcmp.ge.s32.totalorder %v142, 0
  %vm147 = vcmp.ge.s32.totalorder %v143, 0
  %vm148 = vcmp.lt.s32.totalorder %v140, 16
  %vm149 = vcmp.lt.s32.totalorder %v141, 16
  %vm150 = vcmp.lt.s32.totalorder %v142, 16
  %vm151 = vcmp.lt.s32.totalorder %v143, 16
  %vm152 = vmand %vm144, %vm148
  %vm153 = vmand %vm145, %vm149
  %vm154 = vmand %vm146, %vm150
  %vm155 = vmand %vm147, %vm151
  %v156 = vsel %vm152, 1, 0
  %v157 = vsel %vm153, 1, 0
  %v158 = vsel %vm154, 1, 0
  %v159 = vsel %vm155, 1, 0
  %vm160 = vcmp.eq.s32.totalorder %v156, 1
  %vm161 = vcmp.eq.s32.totalorder %v157, 1
  %vm162 = vcmp.eq.s32.totalorder %v158, 1
  %vm163 = vcmp.eq.s32.totalorder %v159, 1
  %v164 = vsel %vm160, %v139, 0.0
  %v165 = vsel %vm161, %v138, 0.0
  %v166 = vsel %vm162, %v137, 0.0
  %v167 = vsel %vm163, %v136, 0.0
  %v168 = vpack.c.bf16 %v164, %v164
  %v169 = vpack.c.bf16 %v165, %v165
  %v170 = vpack.c.bf16 %v166, %v166
  %v171 = vpack.c.bf16 %v167, %v167
  %v172 = vpack.c.bf16 %v127, %v127
  %v173 = vpack.c.bf16 %v128, %v128
  %v174 = vpack.c.bf16 %v129, %v129
  %v175 = vpack.c.bf16 %v130, %v130
  %v176 = vrot.slane %v127, 1
  %v177 = vrot.slane %v128, 1
  %v178 = vrot.slane %v129, 1
  %v179 = vrot.slane %v130, 1
  %vm180 = vcmp.lt.s32.totalorder %v55, 7
  %v181 = vsel %vm180, %v178, %v179
  %v182 = vsel %vm180, %v177, %v178
  %v183 = vsel %vm180, %v176, %v177
  %v184 = vsel %vm180, %v179, %v176
  %v185 = vadd.s32 %v103, 1
  %v186 = vadd.s32 %v104, 1
  %v187 = vadd.s32 %v105, 1
  %v188 = vadd.s32 %v106, 1
  %vm189 = vcmp.ge.s32.totalorder %v185, 0
  %vm190 = vcmp.ge.s32.totalorder %v186, 0
  %vm191 = vcmp.ge.s32.totalorder %v187, 0
  %vm192 = vcmp.ge.s32.totalorder %v188, 0
  %vm193 = vcmp.lt.s32.totalorder %v185, 16
  %vm194 = vcmp.lt.s32.totalorder %v186, 16
  %vm195 = vcmp.lt.s32.totalorder %v187, 16
  %vm196 = vcmp.lt.s32.totalorder %v188, 16
  %vm197 = vmand %vm189, %vm193
  %vm198 = vmand %vm190, %vm194
  %vm199 = vmand %vm191, %vm195
  %vm200 = vmand %vm192, %vm196
  %v201 = vsel %vm197, 1, 0
  %v202 = vsel %vm198, 1, 0
  %v203 = vsel %vm199, 1, 0
  %v204 = vsel %vm200, 1, 0
  %vm205 = vcmp.eq.s32.totalorder %v201, 1
  %vm206 = vcmp.eq.s32.totalorder %v202, 1
  %vm207 = vcmp.eq.s32.totalorder %v203, 1
  %vm208 = vcmp.eq.s32.totalorder %v204, 1
  %v209 = vsel %vm205, %v183, 0.0
  %v210 = vsel %vm206, %v182, 0.0
  %v211 = vsel %vm207, %v181, 0.0
  %v212 = vsel %vm208, %v184, 0.0
  %v213 = vpack.c.bf16 %v209, %v209
  %v214 = vpack.c.bf16 %v210, %v210
  %v215 = vpack.c.bf16 %v211, %v211
  %v216 = vpack.c.bf16 %v212, %v212
  %v221 = vunpack.c.l.b16 %v168
  %v222 = vunpack.c.l.b16 %v169
  %v223 = vunpack.c.l.b16 %v170
  %v224 = vunpack.c.l.b16 %v171
  %v225 = vpack.c.b16 %v222, %v221
  %v226 = vpack.c.b16 %v224, %v223
  %v231 = vunpack.c.l.b16 %v172
  %v232 = vunpack.c.l.b16 %v173
  %v233 = vunpack.c.l.b16 %v174
  %v234 = vunpack.c.l.b16 %v175
  %v235 = vpack.c.b16 %v232, %v231
  %v236 = vpack.c.b16 %v234, %v233
  %237 = vrot.lane.b32.xlu0 %v235, 16
  %v238 = vpop.permute.xlu0 %237
  %239 = vrot.lane.b32.xlu0 %v236, 16
  %v240 = vpop.permute.xlu0 %239
  %v245 = vunpack.c.l.b16 %v213
  %v246 = vunpack.c.l.b16 %v214
  %v247 = vunpack.c.l.b16 %v215
  %v248 = vunpack.c.l.b16 %v216
  %v249 = vpack.c.b16 %v246, %v245
  %v250 = vpack.c.b16 %v248, %v247
  %251 = vrot.lane.b32.xlu0 %v249, 32
  %v252 = vpop.permute.xlu0 %251
  %253 = vrot.lane.b32.xlu0 %v250, 32
  %v254 = vpop.permute.xlu0 %253
  %vm255 = vcmask 130048
  %v258 = vsel %vm255, %v225, %v238
  %v261 = vsel %vm255, %v226, %v240
  %vm262 = vcmask 261120
  %v264 = vsel %vm262, %v258, %v252
  %v266 = vsel %vm262, %v261, %v254
  %v273 = vunpack.c.l.b16 %v27
  %v274 = vunpack.c.l.b16 %v28
  %v275 = vunpack.c.l.b16 %v29
  %v276 = vunpack.c.l.b16 %v30
  %v277 = vunpack.c.l.b16 %v31
  %v278 = vunpack.c.l.b16 %v32
  %v279 = vpack.c.b16 %v274, %v273
  %v280 = vpack.c.b16 %v276, %v275
  %v281 = vpack.c.b16 %v278, %v277
  %vm285 = vcmask 392192
  %v286 = vsel %vm285, %v264, 0
  %v288 = vsel %vm285, %v266, 0
  %290 = vmatpush.bf16.msra.mxu0 0
  %291 = vmatpush.bf16.msra.mxu0 0
  %292 = vmatpush.bf16.msra.mxu0 0
  %293 = vmatpush.bf16.msra.mxu0 0
  %294 = vmatpush.bf16.msra.mxu0 0
  %295 = vmatpush.bf16.msra.mxu0 %v281
  %296 = vmatpush.bf16.msra.mxu0 %v280
  %297 = vmatpush.bf16.msra.mxu0 %v279
  %298 = vmatmul.bf16.gmra.mxu0 %v286
  %v299 = vpop.f32.mrf.mxu0
  %v300 = vadd.f32 %v50, %v299
  %v301 = vpop.f32.mrf.mxu0
  %v302 = vadd.f32 %v50, %v301
  %303 = vmatmul.bf16.gmra.mxu0 %v288
  %v304 = vpop.f32.mrf.mxu0
  %v305 = vadd.f32 %v51, %v304
  %v306 = vpop.f32.mrf.mxu0
  %v307 = vadd.f32 %v51, %v306
  %308 = vdwg.mxu0
  %v309 = vmax.f32 %v300, 0.0
  %v310 = vmax.f32 %v302, 0.0
  %v311 = vmax.f32 %v305, 0.0
  %v312 = vmax.f32 %v307, 0.0
  %v313 = vsel %vm262, %v309, 0.0
  %314 = vadd.xlane.f32.xlu0 %v313
  %v315 = vpop.xlane.xlu0 %314
  %v316 = vsel %vm262, %v310, 0.0
  %317 = vadd.xlane.f32.xlu0 %v316
  %v318 = vpop.xlane.xlu0 %317
  %v319 = vsel %vm262, %v311, 0.0
  %320 = vadd.xlane.f32.xlu0 %v319
  %v321 = vpop.xlane.xlu0 %320
  %v322 = vsel %vm262, %v312, 0.0
  %323 = vadd.xlane.f32.xlu0 %v322
  %v324 = vpop.xlane.xlu0 %323
  %v325 = vrcp.pop 32.0
  %v326 = vmul.f32 32.0, %v325
  %v327 = vsub.f32 1.0, %v326
  %v328 = vmul.f32 %v325, %v327
  %v329 = vadd.f32 %v325, %v328
  %vm330 = vweird.f32 %v325
  %v331 = vsel %vm330, %v325, %v329
  %v332 = vmul.f32 %v315, %v331
  %v333 = vmul.f32 %v318, %v331
  %v334 = vmul.f32 %v321, %v331
  %v335 = vmul.f32 %v324, %v331
  %v336 = vsub.f32 %v309, %v332
  %v337 = vsub.f32 %v310, %v333
  %v338 = vsub.f32 %v311, %v334
  %v339 = vsub.f32 %v312, %v335
  %v340 = vmul.f32 %v336, %v336
  %v341 = vmul.f32 %v337, %v337
  %v342 = vmul.f32 %v338, %v338
  %v343 = vmul.f32 %v339, %v339
  %v344 = vsel %vm262, %v340, 0.0
  %345 = vadd.xlane.f32.xlu0 %v344
  %v346 = vpop.xlane.xlu0 %345
  %v347 = vsel %vm262, %v341, 0.0
  %348 = vadd.xlane.f32.xlu0 %v347
  %v349 = vpop.xlane.xlu0 %348
  %v350 = vsel %vm262, %v342, 0.0
  %351 = vadd.xlane.f32.xlu0 %v350
  %v352 = vpop.xlane.xlu0 %351
  %v353 = vsel %vm262, %v343, 0.0
  %354 = vadd.xlane.f32.xlu0 %v353
  %v355 = vpop.xlane.xlu0 %354
  %v356 = vmul.f32 %v346, %v331
  %v357 = vmul.f32 %v349, %v331
  %v358 = vmul.f32 %v352, %v331
  %v359 = vmul.f32 %v355, %v331
  %v360 = vadd.f32 %v356, 0.0001
  %v361 = vadd.f32 %v357, 0.0001
  %v362 = vadd.f32 %v358, 0.0001
  %v363 = vadd.f32 %v359, 0.0001
  %v364 = vrsqrt.pop %v360
  %v365 = vmul.f32 %v364, %v360
  %v366 = vmul.f32 %v365, %v364
  %v367 = vmul.f32 0.5, %v366
  %v368 = vsub.f32 1.5, %v367
  %v369 = vmul.f32 %v364, %v368
  %vm370 = vweird.f32 %v360
  %vm371 = vweird.f32 %v364
  %vm372 = vmor %vm370, %vm371
  %v373 = vsel %vm372, %v364, %v369
  %v374 = vrsqrt.pop %v361
  %v375 = vmul.f32 %v374, %v361
  %v376 = vmul.f32 %v375, %v374
  %v377 = vmul.f32 0.5, %v376
  %v378 = vsub.f32 1.5, %v377
  %v379 = vmul.f32 %v374, %v378
  %vm380 = vweird.f32 %v361
  %vm381 = vweird.f32 %v374
  %vm382 = vmor %vm380, %vm381
  %v383 = vsel %vm382, %v374, %v379
  %v384 = vrsqrt.pop %v362
  %v385 = vmul.f32 %v384, %v362
  %v386 = vmul.f32 %v385, %v384
  %v387 = vmul.f32 0.5, %v386
  %v388 = vsub.f32 1.5, %v387
  %v389 = vmul.f32 %v384, %v388
  %vm390 = vweird.f32 %v362
  %vm391 = vweird.f32 %v384
  %vm392 = vmor %vm390, %vm391
  %v393 = vsel %vm392, %v384, %v389
  %v394 = vrsqrt.pop %v363
  %v395 = vmul.f32 %v394, %v363
  %v396 = vmul.f32 %v395, %v394
  %v397 = vmul.f32 0.5, %v396
  %v398 = vsub.f32 1.5, %v397
  %v399 = vmul.f32 %v394, %v398
  %vm400 = vweird.f32 %v363
  %vm401 = vweird.f32 %v394
  %vm402 = vmor %vm400, %vm401
  %v403 = vsel %vm402, %v394, %v399
  %v404 = vmul.f32 %v336, %v373
  %v405 = vmul.f32 %v337, %v383
  %v406 = vmul.f32 %v338, %v393
  %v407 = vmul.f32 %v339, %v403
  %v408 = vperm.slane %v26, 0
  %v409 = vmul.f32 %v404, %v408
  %v410 = vmul.f32 %v405, %v408
  %v411 = vmul.f32 %v406, %v408
  %v412 = vmul.f32 %v407, %v408
  %v413 = vperm.slane %v26, 1
  %v414 = vadd.f32 %v409, %v413
  %v415 = vadd.f32 %v410, %v413
  %v416 = vadd.f32 %v411, %v413
  %v417 = vadd.f32 %v412, %v413
  %v418 = vmul.f32 %v414, %v110
  %v419 = vmul.f32 %v415, %v115
  %v420 = vmul.f32 %v416, %v120
  %v421 = vmul.f32 %v417, %v125
  %v422 = vrot.slane %v418, 7
  %v423 = vrot.slane %v419, 7
  %v424 = vrot.slane %v420, 7
  %v425 = vrot.slane %v421, 7
  %v426 = vsel %vm135, %v424, %v425
  %v427 = vsel %vm135, %v423, %v424
  %v428 = vsel %vm135, %v422, %v423
  %v429 = vsel %vm135, %v425, %v422
  %v430 = vsel %vm160, %v429, 0.0
  %v431 = vsel %vm161, %v428, 0.0
  %v432 = vsel %vm162, %v427, 0.0
  %v433 = vsel %vm163, %v426, 0.0
  %v434 = vpack.c.bf16 %v430, %v430
  %v435 = vpack.c.bf16 %v431, %v431
  %v436 = vpack.c.bf16 %v432, %v432
  %v437 = vpack.c.bf16 %v433, %v433
  %v438 = vpack.c.bf16 %v418, %v418
  %v439 = vpack.c.bf16 %v419, %v419
  %v440 = vpack.c.bf16 %v420, %v420
  %v441 = vpack.c.bf16 %v421, %v421
  %v442 = vrot.slane %v418, 1
  %v443 = vrot.slane %v419, 1
  %v444 = vrot.slane %v420, 1
  %v445 = vrot.slane %v421, 1
  %v446 = vsel %vm180, %v444, %v445
  %v447 = vsel %vm180, %v443, %v444
  %v448 = vsel %vm180, %v442, %v443
  %v449 = vsel %vm180, %v445, %v442
  %v450 = vsel %vm205, %v448, 0.0
  %v451 = vsel %vm206, %v447, 0.0
  %v452 = vsel %vm207, %v446, 0.0
  %v453 = vsel %vm208, %v449, 0.0
  %v454 = vpack.c.bf16 %v450, %v450
  %v455 = vpack.c.bf16 %v451, %v451
  %v456 = vpack.c.bf16 %v452, %v452
  %v457 = vpack.c.bf16 %v453, %v453
  %v462 = vunpack.c.l.b16 %v434
  %v463 = vunpack.c.l.b16 %v435
  %v464 = vunpack.c.l.b16 %v436
  %v465 = vunpack.c.l.b16 %v437
  %v466 = vpack.c.b16 %v463, %v462
  %v467 = vpack.c.b16 %v465, %v464
  %v472 = vunpack.c.l.b16 %v438
  %v473 = vunpack.c.l.b16 %v439
  %v474 = vunpack.c.l.b16 %v440
  %v475 = vunpack.c.l.b16 %v441
  %v476 = vpack.c.b16 %v473, %v472
  %v477 = vpack.c.b16 %v475, %v474
  %478 = vrot.lane.b32.xlu0 %v476, 32
  %v479 = vpop.permute.xlu0 %478
  %480 = vrot.lane.b32.xlu0 %v477, 32
  %v481 = vpop.permute.xlu0 %480
  %v486 = vunpack.c.l.b16 %v454
  %v487 = vunpack.c.l.b16 %v455
  %v488 = vunpack.c.l.b16 %v456
  %v489 = vunpack.c.l.b16 %v457
  %v490 = vpack.c.b16 %v487, %v486
  %v491 = vpack.c.b16 %v489, %v488
  %492 = vrot.lane.b32.xlu0 %v490, 64
  %v493 = vpop.permute.xlu0 %492
  %494 = vrot.lane.b32.xlu0 %v491, 64
  %v495 = vpop.permute.xlu0 %494
  %v498 = vsel %vm262, %v466, %v479
  %v501 = vsel %vm262, %v467, %v481
  %vm502 = vcmask 523264
  %v504 = vsel %vm502, %v498, %v493
  %v506 = vsel %vm502, %v501, %v495
  %v519 = vunpack.c.l.b16 %v33
  %v520 = vunpack.c.l.b16 %v34
  %v521 = vunpack.c.l.b16 %v35
  %v522 = vunpack.c.l.b16 %v36
  %v523 = vunpack.c.l.b16 %v37
  %v524 = vunpack.c.l.b16 %v38
  %v525 = vunpack.c.l.b16 %v39
  %v526 = vunpack.c.l.b16 %v40
  %v527 = vunpack.c.l.b16 %v41
  %v528 = vunpack.c.l.b16 %v42
  %v529 = vunpack.c.l.b16 %v43
  %v530 = vunpack.c.l.b16 %v44
  %v531 = vpack.c.b16 %v520, %v519
  %v532 = vpack.c.b16 %v522, %v521
  %v533 = vpack.c.b16 %v524, %v523
  %v534 = vpack.c.b16 %v526, %v525
  %v535 = vpack.c.b16 %v528, %v527
  %v536 = vpack.c.b16 %v530, %v529
  %543 = vrot.lane.b32.xlu0 %v50, 96
  %v544 = vpop.permute.xlu0 %543
  %545 = vrot.lane.b32.xlu0 %v51, 96
  %v546 = vpop.permute.xlu0 %545
  %vm549 = vcmask 785408
  %v550 = vsel %vm549, %v504, 0
  %v552 = vsel %vm549, %v506, 0
  %554 = vmatpush.bf16.msra.mxu0 0
  %555 = vmatpush.bf16.msra.mxu0 0
  %556 = vmatpush.bf16.msra.mxu0 %v536
  %557 = vmatpush.bf16.msra.mxu0 %v535
  %558 = vmatpush.bf16.msra.mxu0 %v534
  %559 = vmatpush.bf16.msra.mxu0 %v533
  %560 = vmatpush.bf16.msra.mxu0 %v532
  %561 = vmatpush.bf16.msra.mxu0 %v531
  %562 = vmatmul.bf16.gmra.mxu0 %v550
  %v563 = vpop.f32.mrf.mxu0
  %v564 = vadd.f32 %v544, %v563
  %v565 = vpop.f32.mrf.mxu0
  %v566 = vadd.f32 %v544, %v565
  %567 = vmatmul.bf16.gmra.mxu0 %v552
  %v568 = vpop.f32.mrf.mxu0
  %v569 = vadd.f32 %v546, %v568
  %v570 = vpop.f32.mrf.mxu0
  %v571 = vadd.f32 %v546, %v570
  %572 = vdwg.mxu0
  %v573 = vmax.f32 %v564, 0.0
  %v574 = vmax.f32 %v566, 0.0
  %v575 = vmax.f32 %v569, 0.0
  %v576 = vmax.f32 %v571, 0.0
  %v577 = vsel %vm262, %v573, 0.0
  %578 = vadd.xlane.f32.xlu0 %v577
  %v579 = vpop.xlane.xlu0 %578
  %v580 = vsel %vm262, %v574, 0.0
  %581 = vadd.xlane.f32.xlu0 %v580
  %v582 = vpop.xlane.xlu0 %581
  %v583 = vsel %vm262, %v575, 0.0
  %584 = vadd.xlane.f32.xlu0 %v583
  %v585 = vpop.xlane.xlu0 %584
  %v586 = vsel %vm262, %v576, 0.0
  %587 = vadd.xlane.f32.xlu0 %v586
  %v588 = vpop.xlane.xlu0 %587
  %v589 = vmul.f32 %v579, %v331
  %v590 = vmul.f32 %v582, %v331
  %v591 = vmul.f32 %v585, %v331
  %v592 = vmul.f32 %v588, %v331
  %v593 = vsub.f32 %v573, %v589
  %v594 = vsub.f32 %v574, %v590
  %v595 = vsub.f32 %v575, %v591
  %v596 = vsub.f32 %v576, %v592
  %v597 = vmul.f32 %v593, %v593
  %v598 = vmul.f32 %v594, %v594
  %v599 = vmul.f32 %v595, %v595
  %v600 = vmul.f32 %v596, %v596
  %v601 = vsel %vm262, %v597, 0.0
  %602 = vadd.xlane.f32.xlu0 %v601
  %v603 = vpop.xlane.xlu0 %602
  %v604 = vsel %vm262, %v598, 0.0
  %605 = vadd.xlane.f32.xlu0 %v604
  %v606 = vpop.xlane.xlu0 %605
  %v607 = vsel %vm262, %v599, 0.0
  %608 = vadd.xlane.f32.xlu0 %v607
  %v609 = vpop.xlane.xlu0 %608
  %v610 = vsel %vm262, %v600, 0.0
  %611 = vadd.xlane.f32.xlu0 %v610
  %v612 = vpop.xlane.xlu0 %611
  %v613 = vmul.f32 %v603, %v331
  %v614 = vmul.f32 %v606, %v331
  %v615 = vmul.f32 %v609, %v331
  %v616 = vmul.f32 %v612, %v331
  %v617 = vadd.f32 %v613, 0.0001
  %v618 = vadd.f32 %v614, 0.0001
  %v619 = vadd.f32 %v615, 0.0001
  %v620 = vadd.f32 %v616, 0.0001
  %v621 = vrsqrt.pop %v617
  %v622 = vmul.f32 %v621, %v617
  %v623 = vmul.f32 %v622, %v621
  %v624 = vmul.f32 0.5, %v623
  %v625 = vsub.f32 1.5, %v624
  %v626 = vmul.f32 %v621, %v625
  %vm627 = vweird.f32 %v617
  %vm628 = vweird.f32 %v621
  %vm629 = vmor %vm627, %vm628
  %v630 = vsel %vm629, %v621, %v626
  %v631 = vrsqrt.pop %v618
  %v632 = vmul.f32 %v631, %v618
  %v633 = vmul.f32 %v632, %v631
  %v634 = vmul.f32 0.5, %v633
  %v635 = vsub.f32 1.5, %v634
  %v636 = vmul.f32 %v631, %v635
  %vm637 = vweird.f32 %v618
  %vm638 = vweird.f32 %v631
  %vm639 = vmor %vm637, %vm638
  %v640 = vsel %vm639, %v631, %v636
  %v641 = vrsqrt.pop %v619
  %v642 = vmul.f32 %v641, %v619
  %v643 = vmul.f32 %v642, %v641
  %v644 = vmul.f32 0.5, %v643
  %v645 = vsub.f32 1.5, %v644
  %v646 = vmul.f32 %v641, %v645
  %vm647 = vweird.f32 %v619
  %vm648 = vweird.f32 %v641
  %vm649 = vmor %vm647, %vm648
  %v650 = vsel %vm649, %v641, %v646
  %v651 = vrsqrt.pop %v620
  %v652 = vmul.f32 %v651, %v620
  %v653 = vmul.f32 %v652, %v651
  %v654 = vmul.f32 0.5, %v653
  %v655 = vsub.f32 1.5, %v654
  %v656 = vmul.f32 %v651, %v655
  %vm657 = vweird.f32 %v620
  %vm658 = vweird.f32 %v651
  %vm659 = vmor %vm657, %vm658
  %v660 = vsel %vm659, %v651, %v656
  %v661 = vmul.f32 %v593, %v630
  %v662 = vmul.f32 %v594, %v640
  %v663 = vmul.f32 %v595, %v650
  %v664 = vmul.f32 %v596, %v660
  %v665 = vperm.slane %v26, 2
  %v666 = vmul.f32 %v661, %v665
  %v667 = vmul.f32 %v662, %v665
  %v668 = vmul.f32 %v663, %v665
  %v669 = vmul.f32 %v664, %v665
  %v670 = vsel %vm262, %v666, 0.0
  %671 = vadd.xlane.f32.xlu0 %v670
  %v672 = vpop.xlane.xlu0 %671
  %v673 = vsel %vm262, %v667, 0.0
  %674 = vadd.xlane.f32.xlu0 %v673
  %v675 = vpop.xlane.xlu0 %674
  %v676 = vsel %vm262, %v668, 0.0
  %677 = vadd.xlane.f32.xlu0 %v676
  %v678 = vpop.xlane.xlu0 %677
  %v679 = vsel %vm262, %v669, 0.0
  %680 = vadd.xlane.f32.xlu0 %v679
  %v681 = vpop.xlane.xlu0 %680
  %v682 = vperm.slane %v26, 3
  %v683 = vadd.f32 %v672, %v682
  %v684 = vadd.f32 %v675, %v682
  %v685 = vadd.f32 %v678, %v682
  %v686 = vadd.f32 %v681, %v682
  %687 = vrot.lane.b32.xlu0 %v22, 112
  %v688 = vpop.permute.xlu0 %687
  %689 = vrot.lane.b32.xlu0 %v23, 112
  %v690 = vpop.permute.xlu0 %689
  %691 = vrot.lane.b32.xlu0 %v24, 112
  %v692 = vpop.permute.xlu0 %691
  %693 = vrot.lane.b32.xlu0 %v25, 112
  %v694 = vpop.permute.xlu0 %693
  %v699 = vmul.f32 %v683, %v688
  %v700 = vmul.f32 %v684, %v690
  %v701 = vmul.f32 %v685, %v692
  %v702 = vmul.f32 %v686, %v694
  %vm703 = vcmask 7168
  %704 = vst.msk [vmem:[%s4] sm:$0xff] %vm703, %v699
  %705 = vst.msk [vmem:[%s4 + $0x8] sm:$0xff] %vm703, %v700
  %706 = vst.msk [vmem:[%s4 + $0x10] sm:$0xff] %vm703, %v701
  %707 = vst.msk [vmem:[%s4 + $0x18] sm:$0xff] %vm703, %v702
  // Predicated region
  $region18: #{tpu_custom_call.1} parent=0 // pred_check
    _
  $region19: #{tpu_custom_call.1} parent=0 // pred_check_branch
    %709 = sbr.rel (0) target = $region21
  $region20: #{tpu_custom_call.1} parent=0 // pred_region
    _
  $region21: #{tpu_custom_call.1} parent=0 // pred_fallthru
    _
  // Predicated region
  $region22: #{tpu_custom_call.1} parent=0 // pred_check
    _
  $region23: #{tpu_custom_call.1} parent=0 // pred_check_branch
    %711 = sbr.rel (0) target = $region25
  $region24: #{tpu_custom_call.1} parent=0 // pred_region
    _
  $region25: #{tpu_custom_call.1} parent=0 // pred_fallthru
    _

</llo_original>
